<compile_context>
chip_gen: v5e
topology: v5e:2x2
jax: 0.10.0
libtpu: 0.0.40
codegen_flags: <defaults>
</compile_context>

<pallas_src>
import functools

import jax
import jax.numpy as jnp
from jax.experimental import pallas as pl
from jax.experimental.pallas import tpu as pltpu

HALF_LOG_2PI = 0.9189385332046727  # 0.5 * log(2*pi)


def _softplus(p):
    """Numerically stable log(1 + exp(p)) (no overflow for large p)."""
    return jnp.maximum(p, 0.0) + jnp.log1p(jnp.exp(-jnp.abs(p)))


def reparam_kl_kernel(w_mu_ref, w_p_ref, eps_w_ref,
                      b_mu_ref, b_p_ref, eps_b_ref,
                      w_ref, b_ref, kl_ref, *, n_batches, d_in, d_out):
    """Grid over d_in tiles: sample a weight block, accumulate KL; bias + finalize on last step."""
    i = pl.program_id(0)
    last = pl.num_programs(0) - 1

    @pl.when(i == 0)
    def _():
        kl_ref[...] = jnp.zeros_like(kl_ref)

    w_mu = w_mu_ref[...]
    eps_w = eps_w_ref[...]
    sigma_w = _softplus(w_p_ref[...])
    w = w_mu + eps_w * sigma_w
    w_ref[...] = w.astype(w_ref.dtype)

    # KL integrand via the (w - mu)/sigma == eps identity (one fewer divide per element,
    # the 0.5*log(2*pi) terms cancel):  log q(w) - log p(w) = -log(sigma) - 0.5*eps^2 + 0.5*w^2
    kl_ref[...] += jnp.sum(-jnp.log(sigma_w) - 0.5 * eps_w * eps_w + 0.5 * w * w,
                           keepdims=True)

    @pl.when(i == last)
    def _():
        b_mu = b_mu_ref[...]
        eps_b = eps_b_ref[...]
        sigma_b = _softplus(b_p_ref[...])
        b = b_mu + eps_b * sigma_b
        b_ref[...] = b.astype(b_ref.dtype)
        kl_b = jnp.sum(-jnp.log(sigma_b) - 0.5 * eps_b * eps_b + 0.5 * b * b,
                       keepdims=True)                               # (1, 1)
        inv_w = 1.0 / (d_in * d_out * n_batches)
        inv_b = 1.0 / (d_out * n_batches)
        kl_ref[...] = kl_ref[...] * inv_w + kl_b * inv_b


def linear_kernel(x_ref, w_ref, b_ref, z_ref):
    """One (batch tile, d_out tile): z = x @ w + b on the MXU with f32 accumulation."""
    z = jnp.dot(x_ref[...], w_ref[...], preferred_element_type=jnp.float32) + b_ref[...]
    z_ref[...] = z.astype(z_ref.dtype)


def linear_variational(x, params, eps_w, eps_b, *, n_batches,
                       block_n=128, block_d=512, block_k=512,
                       compute_dtype=jnp.float32):
    """x: (N, D_in) f32. Returns (z: (N, D_out) f32, kl: scalar f32).

    compute_dtype=jnp.bfloat16 feeds the MXU at full rate on v6e/v7x and halves the
    resident weight VMEM (precision caveat vs. the f32 reference).
    """
    N, d_in = x.shape
    d_out = params["w_mu"].shape[1]

    block_k = min(block_k, d_in)
    block_n = min(block_n, N)
    block_d = min(block_d, d_out)

    # Raise the scoped-VMEM ceiling above the 16 MiB (v5e) / 32 MiB (v6e, v7x) defaults so
    # the larger tiles fit; actual usage at these tile sizes stays well below the limit.
    vmem_limit = 64 * 1024 * 1024

    pinned = pl.Buffered(1)  # block index never changes -> single resident buffer, no double-buffer

    # ---- Kernel 1: reparameterize + KL, streamed over d_in tiles -------------------------
    n_k = pl.cdiv(d_in, block_k)
    w, b, kl = pl.pallas_call(
        functools.partial(reparam_kl_kernel,
                          n_batches=n_batches, d_in=d_in, d_out=d_out),
        out_shape=(
            jax.ShapeDtypeStruct((d_in, d_out), compute_dtype),   # sampled weight
            jax.ShapeDtypeStruct((1, d_out), compute_dtype),      # sampled bias
            jax.ShapeDtypeStruct((1, 1), jnp.float32),            # kl scalar
        ),
        grid_spec=pltpu.PrefetchScalarGridSpec(
            num_scalar_prefetch=0,
            grid=(n_k,),
            in_specs=[
                pl.BlockSpec((block_k, d_out), lambda i: (i, 0)),                         # w_mu
                pl.BlockSpec((block_k, d_out), lambda i: (i, 0)),                         # w_p
                pl.BlockSpec((block_k, d_out), lambda i: (i, 0)),                         # eps_w
                pl.BlockSpec((1, d_out), lambda i: (0, 0), pipeline_mode=pinned),         # b_mu
                pl.BlockSpec((1, d_out), lambda i: (0, 0), pipeline_mode=pinned),         # b_p
                pl.BlockSpec((1, d_out), lambda i: (0, 0), pipeline_mode=pinned),         # eps_b
            ],
            out_specs=(
                pl.BlockSpec((block_k, d_out), lambda i: (i, 0)),
                pl.BlockSpec((1, d_out), lambda i: (0, 0)),
                pl.BlockSpec((1, 1), lambda i: (0, 0)),            # resident KL accumulator
            ),
        ),
        compiler_params=pltpu.CompilerParams(
            dimension_semantics=("arbitrary",),                    # KL accumulates across axis
            vmem_limit_bytes=vmem_limit,
        ),
    )(params["w_mu"], params["w_p"], eps_w,
      params["b_mu"].reshape(1, d_out), params["b_p"].reshape(1, d_out),
      eps_b.reshape(1, d_out))

    # ---- Kernel 2: z = x @ w + b over (batch tiles, d_out tiles) -------------------------
    n_i = pl.cdiv(N, block_n)
    n_j = pl.cdiv(d_out, block_d)
    # If d_out is not tiled, the weight/bias block index never changes: keep a single
    # resident copy instead of double-buffering (halves their VMEM claim).
    w_pipeline = pinned if n_j == 1 else None

    z = pl.pallas_call(
        linear_kernel,
        out_shape=jax.ShapeDtypeStruct((N, d_out), jnp.float32),
        grid_spec=pltpu.PrefetchScalarGridSpec(
            num_scalar_prefetch=0,
            grid=(n_i, n_j),
            in_specs=[
                pl.BlockSpec((block_n, d_in), lambda i, j: (i, 0)),                          # x tile
                pl.BlockSpec((d_in, block_d), lambda i, j: (0, j), pipeline_mode=w_pipeline),  # weight
                pl.BlockSpec((1, block_d), lambda i, j: (0, j), pipeline_mode=w_pipeline),     # bias
            ],
            out_specs=pl.BlockSpec((block_n, block_d), lambda i, j: (i, j)),
        ),
        compiler_params=pltpu.CompilerParams(
            dimension_semantics=("parallel", "parallel"),  # megacore sharding on v7x
            vmem_limit_bytes=vmem_limit,
        ),
    )(x.astype(compute_dtype), w, b)

    return z, kl[0, 0]


def linear_variational_ref(x, params, eps_w, eps_b, *, n_batches):
    """Pure-JAX reference mirroring the PyTorch forward (naive formulas)."""
    sigma_w = jnp.log(1.0 + jnp.exp(params["w_p"]))
    w = params["w_mu"] + eps_w * sigma_w
    sigma_b = jnp.log(1.0 + jnp.exp(params["b_p"]))
    b = params["b_mu"] + eps_b * sigma_b
    z = x @ w + b

    def kl_term(zv, mu, sigma):
        log_prior = -HALF_LOG_2PI - 0.5 * zv * zv
        log_p_q = -HALF_LOG_2PI - jnp.log(sigma) - 0.5 * ((zv - mu) / sigma) ** 2
        return jnp.mean(log_p_q - log_prior) / n_batches

    kl = kl_term(w, params["w_mu"], sigma_w) + kl_term(b, params["b_mu"], sigma_b)
    return z, kl


if __name__ == "__main__":
    N, D_IN, D_OUT = 32, 64, 128      # batch, in_features, out_features (lane-dense d_out)
    N_BATCHES = 4

    key = jax.random.PRNGKey(0)
    k_x, k_wmu, k_wp, k_ew, k_eb = jax.random.split(key, 5)

    x = jax.random.normal(k_x, (N, D_IN), dtype=jnp.float32)
    params = {
        # Matches PyTorch init: w_mu ~ N(0, 0.01), w_p ~ N(-5, 0.01), b_mu = 0, b_p = -5
        "w_mu": 0.01 * jax.random.normal(k_wmu, (D_IN, D_OUT), dtype=jnp.float32),
        "w_p": -5.0 + 0.01 * jax.random.normal(k_wp, (D_IN, D_OUT), dtype=jnp.float32),
        "b_mu": jnp.zeros((D_OUT,), dtype=jnp.float32),
        "b_p": jnp.zeros((D_OUT,), dtype=jnp.float32) - 5.0,
    }
    # torch.randn_like equivalents (passed in so kernel vs. reference use identical noise)
    eps_w = jax.random.normal(k_ew, (D_IN, D_OUT), dtype=jnp.float32)
    eps_b = jax.random.normal(k_eb, (D_OUT,), dtype=jnp.float32)

    z_ref, kl_ref = linear_variational_ref(x, params, eps_w, eps_b, n_batches=N_BATCHES)

    # 1) Default (perf-sized) blocks -> clamp to full dims here, single grid step per kernel.
    z, kl = linear_variational(x, params, eps_w, eps_b, n_batches=N_BATCHES)
    z = jax.block_until_ready(z)
    kl = jax.block_until_ready(kl)
    assert z.shape == (N, D_OUT), z.shape
    assert jnp.allclose(z, z_ref, atol=1e-4, rtol=1e-4), (z, z_ref)
    assert jnp.allclose(kl, kl_ref, atol=1e-4, rtol=1e-4), (kl, kl_ref)

    # 2) Small blocks -> multi-step grids; exercises the resident-KL accumulator, the
    #    pl.when init/finalize path and the pinned (Buffered(1)) weight across grid steps.
    z2, kl2 = linear_variational(x, params, eps_w, eps_b, n_batches=N_BATCHES,
                                 block_n=16, block_d=128, block_k=32)
    z2 = jax.block_until_ready(z2)
    kl2 = jax.block_until_ready(kl2)
    assert jnp.allclose(z2, z_ref, atol=1e-4, rtol=1e-4), (z2, z_ref)
    assert jnp.allclose(kl2, kl_ref, atol=1e-4, rtol=1e-4), (kl2, kl_ref)

    print("KERNEL_OK")
</pallas_src>

<mosaic_0001>
module attributes {stable_mosaic.version = 11 : i64} {
  func.func @reparam_kl_kernel(%arg0: i32, %arg1: memref<64x128xf32, #tpu.memory_space<vmem>>, %arg2: memref<64x128xf32, #tpu.memory_space<vmem>>, %arg3: memref<64x128xf32, #tpu.memory_space<vmem>>, %arg4: memref<1x128xf32, #tpu.memory_space<vmem>>, %arg5: memref<1x128xf32, #tpu.memory_space<vmem>>, %arg6: memref<1x128xf32, #tpu.memory_space<vmem>>, %arg7: memref<64x128xf32, #tpu.memory_space<vmem>>, %arg8: memref<1x128xf32, #tpu.memory_space<vmem>>, %arg9: memref<1x1xf32, #tpu.memory_space<vmem>>) attributes {dimension_semantics = [#tpu.dimension_semantics<arbitrary>], iteration_bounds = array<i64: 1>, scalar_prefetch = 0 : i64, scratch_operands = 0 : i64, tpu.core_type = #tpu.core_type<tc>, window_params = [{transform_indices = @transform_0, window_bounds = array<i64: 64, 128>}, {transform_indices = @transform_1, window_bounds = array<i64: 64, 128>}, {transform_indices = @transform_2, window_bounds = array<i64: 64, 128>}, {pipeline_mode = #tpu.pipeline_mode<synchronous>, transform_indices = @transform_3, window_bounds = array<i64: 1, 128>}, {pipeline_mode = #tpu.pipeline_mode<synchronous>, transform_indices = @transform_4, window_bounds = array<i64: 1, 128>}, {pipeline_mode = #tpu.pipeline_mode<synchronous>, transform_indices = @transform_5, window_bounds = array<i64: 1, 128>}, {transform_indices = @transform_6, window_bounds = array<i64: 64, 128>}, {pipeline_mode = #tpu.pipeline_mode<synchronous>, transform_indices = @transform_7, window_bounds = array<i64: 1, 128>}, {pipeline_mode = #tpu.pipeline_mode<synchronous>, transform_indices = @transform_8, window_bounds = array<i64: 1, 1>}]} {
    %c0_i32 = arith.constant 0 : i32
    %0 = arith.cmpi eq, %arg0, %c0_i32 : i32
    %1 = arith.extui %0 : i1 to i32
    %c0_i32_0 = arith.constant 0 : i32
    %2 = arith.cmpi ne, %1, %c0_i32_0 : i32
    scf.if %2 {
      %cst_19 = arith.constant 0.000000e+00 : f32
      %39 = vector.broadcast %cst_19 : f32 to vector<1x1xf32>
      %c0_20 = arith.constant 0 : index
      %c0_21 = arith.constant 0 : index
      %40 = vector.load %arg9[%c0_20, %c0_21] : memref<1x1xf32, #tpu.memory_space<vmem>>, vector<1x1xf32>
      tpu.vector_store %arg9[%c0_20, %c0_21], %39 {strides = array<i32>} : memref<1x1xf32, #tpu.memory_space<vmem>>, vector<1x1xf32>,
    } else {
    }
    %c0 = arith.constant 0 : index
    %c0_1 = arith.constant 0 : index
    %3 = vector.load %arg1[%c0, %c0_1] : memref<64x128xf32, #tpu.memory_space<vmem>>, vector<64x128xf32>
    %c0_2 = arith.constant 0 : index
    %c0_3 = arith.constant 0 : index
    %4 = vector.load %arg3[%c0_2, %c0_3] : memref<64x128xf32, #tpu.memory_space<vmem>>, vector<64x128xf32>
    %c0_4 = arith.constant 0 : index
    %c0_5 = arith.constant 0 : index
    %5 = vector.load %arg2[%c0_4, %c0_5] : memref<64x128xf32, #tpu.memory_space<vmem>>, vector<64x128xf32>
    %cst = arith.constant 0.000000e+00 : f32
    %6 = vector.broadcast %cst : f32 to vector<64x128xf32>
    %7 = arith.maximumf %5, %6 : vector<64x128xf32>
    %8 = math.absf %5 : vector<64x128xf32>
    %cst_6 = arith.constant 0.000000e+00 : f32
    %9 = vector.broadcast %cst_6 : f32 to vector<64x128xf32>
    %10 = arith.subf %9, %8 : vector<64x128xf32>
    %11 = math.exp %10 : vector<64x128xf32>
    %12 = math.log1p %11 : vector<64x128xf32>
    %13 = arith.addf %7, %12 : vector<64x128xf32>
    %14 = arith.mulf %4, %13 : vector<64x128xf32>
    %15 = arith.addf %3, %14 : vector<64x128xf32>
    %c0_7 = arith.constant 0 : index
    %c0_8 = arith.constant 0 : index
    %16 = vector.load %arg7[%c0_7, %c0_8] : memref<64x128xf32, #tpu.memory_space<vmem>>, vector<64x128xf32>
    tpu.vector_store %arg7[%c0_7, %c0_8], %15 {strides = array<i32>} : memref<64x128xf32, #tpu.memory_space<vmem>>, vector<64x128xf32>,
    %c0_9 = arith.constant 0 : index
    %c0_10 = arith.constant 0 : index
    %17 = vector.load %arg9[%c0_9, %c0_10] : memref<1x1xf32, #tpu.memory_space<vmem>>, vector<1x1xf32>
    %18 = math.log %13 : vector<64x128xf32>
    %cst_11 = arith.constant 0.000000e+00 : f32
    %19 = vector.broadcast %cst_11 : f32 to vector<64x128xf32>
    %20 = arith.subf %19, %18 : vector<64x128xf32>
    %cst_12 = arith.constant 5.000000e-01 : f32
    %21 = vector.broadcast %cst_12 : f32 to vector<64x128xf32>
    %22 = arith.mulf %21, %4 : vector<64x128xf32>
    %23 = arith.mulf %22, %4 : vector<64x128xf32>
    %24 = arith.subf %20, %23 : vector<64x128xf32>
    %cst_13 = arith.constant 5.000000e-01 : f32
    %25 = vector.broadcast %cst_13 : f32 to vector<64x128xf32>
    %26 = arith.mulf %25, %15 : vector<64x128xf32>
    %27 = arith.mulf %26, %15 : vector<64x128xf32>
    %28 = arith.addf %24, %27 : vector<64x128xf32>
    %29 = vector.shape_cast %28 : vector<64x128xf32> to vector<1x64x128xf32>
    %cst_14 = arith.constant dense<0.000000e+00> : vector<1xf32>
    %30 = vector.multi_reduction <add>, %29, %cst_14 [1, 2] : vector<1x64x128xf32> to vector<1xf32>
    %31 = vector.shape_cast %30 : vector<1xf32> to vector<1x1x1xf32>
    %32 = vector.extract %31[0, 0, 0] : f32 from vector<1x1x1xf32>
    %33 = vector.broadcast %32 : f32 to vector<1x1xf32>
    %34 = arith.addf %17, %33 : vector<1x1xf32>
    %c0_15 = arith.constant 0 : index
    %c0_16 = arith.constant 0 : index
    %35 = vector.load %arg9[%c0_15, %c0_16] : memref<1x1xf32, #tpu.memory_space<vmem>>, vector<1x1xf32>
    tpu.vector_store %arg9[%c0_15, %c0_16], %34 {strides = array<i32>} : memref<1x1xf32, #tpu.memory_space<vmem>>, vector<1x1xf32>,
    %c0_i32_17 = arith.constant 0 : i32
    %36 = arith.cmpi eq, %arg0, %c0_i32_17 : i32
    %37 = arith.extui %36 : i1 to i32
    %c0_i32_18 = arith.constant 0 : i32
    %38 = arith.cmpi ne, %37, %c0_i32_18 : i32
    scf.if %38 {
      %c0_19 = arith.constant 0 : index
      %c0_20 = arith.constant 0 : index
      %39 = vector.load %arg4[%c0_19, %c0_20] : memref<1x128xf32, #tpu.memory_space<vmem>>, vector<1x128xf32>
      %c0_21 = arith.constant 0 : index
      %c0_22 = arith.constant 0 : index
      %40 = vector.load %arg6[%c0_21, %c0_22] : memref<1x128xf32, #tpu.memory_space<vmem>>, vector<1x128xf32>
      %c0_23 = arith.constant 0 : index
      %c0_24 = arith.constant 0 : index
      %41 = vector.load %arg5[%c0_23, %c0_24] : memref<1x128xf32, #tpu.memory_space<vmem>>, vector<1x128xf32>
      %cst_25 = arith.constant 0.000000e+00 : f32
      %42 = vector.broadcast %cst_25 : f32 to vector<1x128xf32>
      %43 = arith.maximumf %41, %42 : vector<1x128xf32>
      %44 = math.absf %41 : vector<1x128xf32>
      %cst_26 = arith.constant 0.000000e+00 : f32
      %45 = vector.broadcast %cst_26 : f32 to vector<1x128xf32>
      %46 = arith.subf %45, %44 : vector<1x128xf32>
      %47 = math.exp %46 : vector<1x128xf32>
      %48 = math.log1p %47 : vector<1x128xf32>
      %49 = arith.addf %43, %48 : vector<1x128xf32>
      %50 = arith.mulf %40, %49 : vector<1x128xf32>
      %51 = arith.addf %39, %50 : vector<1x128xf32>
      %c0_27 = arith.constant 0 : index
      %c0_28 = arith.constant 0 : index
      %52 = vector.load %arg8[%c0_27, %c0_28] : memref<1x128xf32, #tpu.memory_space<vmem>>, vector<1x128xf32>
      tpu.vector_store %arg8[%c0_27, %c0_28], %51 {strides = array<i32>} : memref<1x128xf32, #tpu.memory_space<vmem>>, vector<1x128xf32>,
      %53 = math.log %49 : vector<1x128xf32>
      %cst_29 = arith.constant 0.000000e+00 : f32
      %54 = vector.broadcast %cst_29 : f32 to vector<1x128xf32>
      %55 = arith.subf %54, %53 : vector<1x128xf32>
      %cst_30 = arith.constant 5.000000e-01 : f32
      %56 = vector.broadcast %cst_30 : f32 to vector<1x128xf32>
      %57 = arith.mulf %56, %40 : vector<1x128xf32>
      %58 = arith.mulf %57, %40 : vector<1x128xf32>
      %59 = arith.subf %55, %58 : vector<1x128xf32>
      %cst_31 = arith.constant 5.000000e-01 : f32
      %60 = vector.broadcast %cst_31 : f32 to vector<1x128xf32>
      %61 = arith.mulf %60, %51 : vector<1x128xf32>
      %62 = arith.mulf %61, %51 : vector<1x128xf32>
      %63 = arith.addf %59, %62 : vector<1x128xf32>
      %64 = vector.shape_cast %63 : vector<1x128xf32> to vector<1x1x128xf32>
      %cst_32 = arith.constant dense<0.000000e+00> : vector<1xf32>
      %65 = vector.multi_reduction <add>, %64, %cst_32 [1, 2] : vector<1x1x128xf32> to vector<1xf32>
      %66 = vector.shape_cast %65 : vector<1xf32> to vector<1x1x1xf32>
      %67 = vector.extract %66[0, 0, 0] : f32 from vector<1x1x1xf32>
      %68 = vector.broadcast %67 : f32 to vector<1x1xf32>
      %c0_33 = arith.constant 0 : index
      %c0_34 = arith.constant 0 : index
      %69 = vector.load %arg9[%c0_33, %c0_34] : memref<1x1xf32, #tpu.memory_space<vmem>>, vector<1x1xf32>
      %cst_35 = arith.constant 3.05175781E-5 : f32
      %70 = vector.broadcast %cst_35 : f32 to vector<1x1xf32>
      %71 = arith.mulf %69, %70 : vector<1x1xf32>
      %cst_36 = arith.constant 0.001953125 : f32
      %72 = vector.broadcast %cst_36 : f32 to vector<1x1xf32>
      %73 = arith.mulf %68, %72 : vector<1x1xf32>
      %74 = arith.addf %71, %73 : vector<1x1xf32>
      %c0_37 = arith.constant 0 : index
      %c0_38 = arith.constant 0 : index
      %75 = vector.load %arg9[%c0_37, %c0_38] : memref<1x1xf32, #tpu.memory_space<vmem>>, vector<1x1xf32>
      tpu.vector_store %arg9[%c0_37, %c0_38], %74 {strides = array<i32>} : memref<1x1xf32, #tpu.memory_space<vmem>>, vector<1x1xf32>,
    } else {
    }
    return
  }
  func.func @transform_0(%arg0: i32) -> (i32, i32) {
    %c0_i32 = arith.constant 0 : i32
    %c0_i32_0 = arith.constant 0 : i32
    return %arg0, %c0_i32 : i32, i32
  }
  func.func @transform_1(%arg0: i32) -> (i32, i32) {
    %c0_i32 = arith.constant 0 : i32
    %c0_i32_0 = arith.constant 0 : i32
    return %arg0, %c0_i32 : i32, i32
  }
  func.func @transform_2(%arg0: i32) -> (i32, i32) {
    %c0_i32 = arith.constant 0 : i32
    %c0_i32_0 = arith.constant 0 : i32
    return %arg0, %c0_i32 : i32, i32
  }
  func.func @transform_3(%arg0: i32) -> (i32, i32) {
    %c0_i32 = arith.constant 0 : i32
    %c0_i32_0 = arith.constant 0 : i32
    %c0_i32_1 = arith.constant 0 : i32
    return %c0_i32, %c0_i32_0 : i32, i32
  }
  func.func @transform_4(%arg0: i32) -> (i32, i32) {
    %c0_i32 = arith.constant 0 : i32
    %c0_i32_0 = arith.constant 0 : i32
    %c0_i32_1 = arith.constant 0 : i32
    return %c0_i32, %c0_i32_0 : i32, i32
  }
  func.func @transform_5(%arg0: i32) -> (i32, i32) {
    %c0_i32 = arith.constant 0 : i32
    %c0_i32_0 = arith.constant 0 : i32
    %c0_i32_1 = arith.constant 0 : i32
    return %c0_i32, %c0_i32_0 : i32, i32
  }
  func.func @transform_6(%arg0: i32) -> (i32, i32) {
    %c0_i32 = arith.constant 0 : i32
    %c0_i32_0 = arith.constant 0 : i32
    return %arg0, %c0_i32 : i32, i32
  }
  func.func @transform_7(%arg0: i32) -> (i32, i32) {
    %c0_i32 = arith.constant 0 : i32
    %c0_i32_0 = arith.constant 0 : i32
    %c0_i32_1 = arith.constant 0 : i32
    return %c0_i32, %c0_i32_0 : i32, i32
  }
  func.func @transform_8(%arg0: i32) -> (i32, i32) {
    %c0_i32 = arith.constant 0 : i32
    %c0_i32_0 = arith.constant 0 : i32
    %c0_i32_1 = arith.constant 0 : i32
    return %c0_i32, %c0_i32_0 : i32, i32
  }
}

</mosaic_0001>

<llo_original>
// kernel: tpu_custom_call.1
$region0: #{tpu_custom_call.1}
  #allocation0 [shape = 'u32[]', space=smem, size = 0x4, offset = 0x4, fixed_abs, tag = 'smem constant byte address 0x4 - core index']
  #allocation1 [shape = 'u32[72,128]{1,0:T(1,128)}', space=vmem, size = 0x9000, scoped, tag = 'internal scratch']
  %s0 = inlined_call_operand.hbm [shape: f32[64,128], index: 0, kind: input, shape index: {}]
  %s1 = inlined_call_operand.hbm [shape: f32[64,128], index: 1, kind: input, shape index: {}]
  %s2 = inlined_call_operand.hbm [shape: f32[64,128], index: 2, kind: input, shape index: {}]
  %s3 = inlined_call_operand.vmem [shape: f32[1,128], index: 3, kind: input, shape index: {}]
  %s4 = inlined_call_operand.vmem [shape: f32[1,128], index: 4, kind: input, shape index: {}]
  %s5 = inlined_call_operand.vmem [shape: f32[1,128], index: 5, kind: input, shape index: {}]
  %s6 = inlined_call_operand.hbm [shape: f32[64,128], index: 6, kind: output, shape index: {0}]
  %s7 = inlined_call_operand.hbm [shape: f32[1,128], index: 7, kind: output, shape index: {1}]
  %s8 = inlined_call_operand.hbm [shape: f32[1,1], index: 8, kind: output, shape index: {2}]
  %9 = xla_tuple %s6, %s7, %s8
  %s10 = sld [smem:[#allocation0]]
  $region70: #{tpu_custom_call.1} parent=0
    _
  %s12 = ssub.s32 1, %s10
  %s13 = scalar_select 0, %s12, %s10
  $region1: #{tpu_custom_call.1} parent=0
    #allocation2 [shape = 'u8[32768]{0}', space=vmem, size = 0x8000, scoped, tag = 'input window, operand 0, single buffered']
    #allocation3 [shape = 's32[1]{0}', space=sflag, size = 0x4, scoped, tag = 'scoped memory for tpu_custom_call.1']
    #allocation4 [shape = 's32[1]{0}', space=sflag, size = 0x4, scoped, tag = 'scoped memory for tpu_custom_call.1']
    #allocation5 [shape = 'u8[32768]{0}', space=vmem, size = 0x8000, scoped, tag = 'input window, operand 1, single buffered']
    #allocation6 [shape = 's32[1]{0}', space=sflag, size = 0x4, scoped, tag = 'scoped memory for tpu_custom_call.1']
    #allocation7 [shape = 'u8[32768]{0}', space=vmem, size = 0x8000, scoped, tag = 'input window, operand 2, single buffered']
    #allocation8 [shape = 'u8[32768]{0}', space=vmem, size = 0x8000, scoped, tag = 'output window, operand 0, single buffered']
    #allocation9 [shape = 'u8[512]{0}', space=vmem, size = 0x400, scoped, tag = 'output window, operand 1, single buffered']
    #allocation10 [shape = 's32[1]{0}', space=sflag, size = 0x4, scoped, tag = 'scoped memory for tpu_custom_call.1']
    #allocation11 [shape = 'u8[512]{0}', space=vmem, size = 0x400, scoped, tag = 'output window, operand 2, single buffered']
    %14 = vsyncpa [#allocation3], 0
    %15 = vsyncpa [#allocation6], 0
    %16 = vsyncpa [#allocation4], 0
    %17 = vsyncpa [#allocation10], 0
    // Predicated region
    $region2: #{tpu_custom_call.1} parent=1 // pred_check
      _
    $region3: #{tpu_custom_call.1} parent=1 // pred_check_branch
      %19 = sbr.rel (0) target = $region5
    $region4: #{tpu_custom_call.1} parent=1 // pred_region
      %21 = vsyncadd [#allocation3], 0
      %s22 = sshll.u32 %s0, 4
      %s23 = int_to_ptr.hbm [resolvable:$true] %s22
      %s24 = sshll.u32 [#allocation2], 4
      %s25 = int_to_ptr.vmem [resolvable:$true] %s24
      %30 = dma.hbm_to_vmem [thread:$0]  %s23, 1024, %s25, [#allocation3], 128, 128, 8
    $region5: #{tpu_custom_call.1} parent=1 // pred_fallthru
      _
    // Predicated region
    $region6: #{tpu_custom_call.1} parent=1 // pred_check
      _
    $region7: #{tpu_custom_call.1} parent=1 // pred_check_branch
      %32 = sbr.rel (0) target = $region9
    $region8: #{tpu_custom_call.1} parent=1 // pred_region
      %34 = vsyncadd [#allocation6], 0
      %s35 = sshll.u32 %s1, 4
      %s36 = int_to_ptr.hbm [resolvable:$true] %s35
      %s37 = sshll.u32 [#allocation5], 4
      %s38 = int_to_ptr.vmem [resolvable:$true] %s37
      %43 = dma.hbm_to_vmem [thread:$0]  %s36, 1024, %s38, [#allocation6], 128, 128, 8
    $region9: #{tpu_custom_call.1} parent=1 // pred_fallthru
      _
    // Predicated region
    $region10: #{tpu_custom_call.1} parent=1 // pred_check
      _
    $region11: #{tpu_custom_call.1} parent=1 // pred_check_branch
      %45 = sbr.rel (0) target = $region13
    $region12: #{tpu_custom_call.1} parent=1 // pred_region
      %47 = vsyncadd [#allocation6], 0
      %s48 = sshll.u32 %s2, 4
      %s49 = int_to_ptr.hbm [resolvable:$true] %s48
      %s50 = sshll.u32 [#allocation7], 4
      %s51 = int_to_ptr.vmem [resolvable:$true] %s50
      %56 = dma.hbm_to_vmem [thread:$0]  %s49, 1024, %s51, [#allocation6], 128, 128, 8
    $region13: #{tpu_custom_call.1} parent=1 // pred_fallthru
      _
    // Predicated region
    $region14: #{tpu_custom_call.1} parent=1 // pred_check
      _
    $region15: #{tpu_custom_call.1} parent=1 // pred_check_branch
      %58 = sbr.rel (0) target = $region17
    $region16: #{tpu_custom_call.1} parent=1 // pred_region
      _
    $region17: #{tpu_custom_call.1} parent=1 // pred_fallthru
      _
    // Predicated region
    $region18: #{tpu_custom_call.1} parent=1 // pred_check
      _
    $region19: #{tpu_custom_call.1} parent=1 // pred_check_branch
      %60 = sbr.rel (0) target = $region21
    $region20: #{tpu_custom_call.1} parent=1 // pred_region
      _
    $region21: #{tpu_custom_call.1} parent=1 // pred_fallthru
      _
    // Predicated region
    $region22: #{tpu_custom_call.1} parent=1 // pred_check
      _
    $region23: #{tpu_custom_call.1} parent=1 // pred_check_branch
      %62 = sbr.rel (0) target = $region25
    $region24: #{tpu_custom_call.1} parent=1 // pred_region
      _
    $region25: #{tpu_custom_call.1} parent=1 // pred_fallthru
      _
    // Predicated region
    $region26: #{tpu_custom_call.1} parent=1 // pred_check
      _
    $region27: #{tpu_custom_call.1} parent=1 // pred_check_branch
      %64 = sbr.rel (0) target = $region29
    $region28: #{tpu_custom_call.1} parent=1 // pred_region
      %66 = dma.done [#allocation3], 1024
    $region29: #{tpu_custom_call.1} parent=1 // pred_fallthru
      _
    // Predicated region
    $region30: #{tpu_custom_call.1} parent=1 // pred_check
      _
    $region31: #{tpu_custom_call.1} parent=1 // pred_check_branch
      %68 = sbr.rel (0) target = $region33
    $region32: #{tpu_custom_call.1} parent=1 // pred_region
      %70 = dma.done [#allocation6], 1024
    $region33: #{tpu_custom_call.1} parent=1 // pred_fallthru
      _
    // Predicated region
    $region34: #{tpu_custom_call.1} parent=1 // pred_check
      _
    $region35: #{tpu_custom_call.1} parent=1 // pred_check_branch
      %72 = sbr.rel (0) target = $region37
    $region36: #{tpu_custom_call.1} parent=1 // pred_region
      %74 = dma.done [#allocation6], 1024
    $region37: #{tpu_custom_call.1} parent=1 // pred_fallthru
      _
    %p75 = scmp.eq.s32.totalorder 0, 0
    // Predicated region
    $region38: #{tpu_custom_call.1} parent=1 // pred_check
      %p76 = pneg %p75
    $region39: #{tpu_custom_call.1} parent=1 // pred_check_branch
      %78 = sbr.rel (%p76) target = $region41
    $region40: #{tpu_custom_call.1} parent=1 // pred_region
      %vm79 = vcmask 0
      %80 = vst.msk [vmem:[#allocation11] sm:$0x1] %vm79, 0.0
    $region41: #{tpu_custom_call.1} parent=1 // pred_fallthru
      _
    %v81 = vld [vmem:[#allocation2] sm:$0xff]
    %v82 = vld [vmem:[#allocation2 + $0x8] sm:$0xff]
    %v83 = vld [vmem:[#allocation2 + $0x10] sm:$0xff]
    %v84 = vld [vmem:[#allocation2 + $0x18] sm:$0xff]
    %v85 = vld [vmem:[#allocation2 + $0x20] sm:$0xff]
    %v86 = vld [vmem:[#allocation2 + $0x28] sm:$0xff]
    %v87 = vld [vmem:[#allocation2 + $0x30] sm:$0xff]
    %v88 = vld [vmem:[#allocation2 + $0x38] sm:$0xff]
    %v89 = vld [vmem:[#allocation7] sm:$0xff]
    %v90 = vld [vmem:[#allocation7 + $0x8] sm:$0xff]
    %v91 = vld [vmem:[#allocation7 + $0x10] sm:$0xff]
    %v92 = vld [vmem:[#allocation7 + $0x18] sm:$0xff]
    %v93 = vld [vmem:[#allocation7 + $0x20] sm:$0xff]
    %v94 = vld [vmem:[#allocation7 + $0x28] sm:$0xff]
    %v95 = vld [vmem:[#allocation7 + $0x30] sm:$0xff]
    %v96 = vld [vmem:[#allocation7 + $0x38] sm:$0xff]
    %v97 = vld [vmem:[#allocation5] sm:$0xff]
    %v98 = vld [vmem:[#allocation5 + $0x8] sm:$0xff]
    %v99 = vld [vmem:[#allocation5 + $0x10] sm:$0xff]
    %v100 = vld [vmem:[#allocation5 + $0x18] sm:$0xff]
    %v101 = vld [vmem:[#allocation5 + $0x20] sm:$0xff]
    %v102 = vld [vmem:[#allocation5 + $0x28] sm:$0xff]
    %v103 = vld [vmem:[#allocation5 + $0x30] sm:$0xff]
    %v104 = vld [vmem:[#allocation5 + $0x38] sm:$0xff]
    %v105 = vmax.f32 %v97, 0.0
    %v106 = vmax.f32 %v98, 0.0
    %v107 = vmax.f32 %v99, 0.0
    %v108 = vmax.f32 %v100, 0.0
    %v109 = vmax.f32 %v101, 0.0
    %v110 = vmax.f32 %v102, 0.0
    %v111 = vmax.f32 %v103, 0.0
    %v112 = vmax.f32 %v104, 0.0
    %v113 = vand.u32 2147483647, %v97
    %v114 = vand.u32 2147483647, %v98
    %v115 = vand.u32 2147483647, %v99
    %v116 = vand.u32 2147483647, %v100
    %v117 = vand.u32 2147483647, %v101
    %v118 = vand.u32 2147483647, %v102
    %v119 = vand.u32 2147483647, %v103
    %v120 = vand.u32 2147483647, %v104
    %v121 = vsub.f32 0.0, %v113
    %v122 = vsub.f32 0.0, %v114
    %v123 = vsub.f32 0.0, %v115
    %v124 = vsub.f32 0.0, %v116
    %v125 = vsub.f32 0.0, %v117
    %v126 = vsub.f32 0.0, %v118
    %v127 = vsub.f32 0.0, %v119
    %v128 = vsub.f32 0.0, %v120
    %v129 = vmul.f32 %v121, 1.442695
    %v130 = vpow.pop %v129
    %v131 = vmul.f32 %v122, 1.442695
    %v132 = vpow.pop %v131
    %v133 = vmul.f32 %v123, 1.442695
    %v134 = vpow.pop %v133
    %v135 = vmul.f32 %v124, 1.442695
    %v136 = vpow.pop %v135
    %v137 = vmul.f32 %v125, 1.442695
    %v138 = vpow.pop %v137
    %v139 = vmul.f32 %v126, 1.442695
    %v140 = vpow.pop %v139
    %v141 = vmul.f32 %v127, 1.442695
    %v142 = vpow.pop %v141
    %v143 = vmul.f32 %v128, 1.442695
    %v144 = vpow.pop %v143
    %v145 = vadd.f32 %v130, 1.0
    %v146 = vlog2.pop %v145
    %v147 = vmul.f32 %v146, 0.6931472
    %v148 = vmul.f32 -0.5, %v130
    %v149 = vadd.f32 %v148, 1.0
    %v150 = vmul.f32 %v149, %v130
    %v151 = vand.u32 2147483647, %v130
    %vm152 = vcmp.lt.f32.partialorder %v151, 0.0004427343
    %v153 = vsel %vm152, %v150, %v147
    %v154 = vadd.f32 %v132, 1.0
    %v155 = vlog2.pop %v154
    %v156 = vmul.f32 %v155, 0.6931472
    %v157 = vmul.f32 -0.5, %v132
    %v158 = vadd.f32 %v157, 1.0
    %v159 = vmul.f32 %v158, %v132
    %v160 = vand.u32 2147483647, %v132
    %vm161 = vcmp.lt.f32.partialorder %v160, 0.0004427343
    %v162 = vsel %vm161, %v159, %v156
    %v163 = vadd.f32 %v134, 1.0
    %v164 = vlog2.pop %v163
    %v165 = vmul.f32 %v164, 0.6931472
    %v166 = vmul.f32 -0.5, %v134
    %v167 = vadd.f32 %v166, 1.0
    %v168 = vmul.f32 %v167, %v134
    %v169 = vand.u32 2147483647, %v134
    %vm170 = vcmp.lt.f32.partialorder %v169, 0.0004427343
    %v171 = vsel %vm170, %v168, %v165
    %v172 = vadd.f32 %v136, 1.0
    %v173 = vlog2.pop %v172
    %v174 = vmul.f32 %v173, 0.6931472
    %v175 = vmul.f32 -0.5, %v136
    %v176 = vadd.f32 %v175, 1.0
    %v177 = vmul.f32 %v176, %v136
    %v178 = vand.u32 2147483647, %v136
    %vm179 = vcmp.lt.f32.partialorder %v178, 0.0004427343
    %v180 = vsel %vm179, %v177, %v174
    %v181 = vadd.f32 %v138, 1.0
    %v182 = vlog2.pop %v181
    %v183 = vmul.f32 %v182, 0.6931472
    %v184 = vmul.f32 -0.5, %v138
    %v185 = vadd.f32 %v184, 1.0
    %v186 = vmul.f32 %v185, %v138
    %v187 = vand.u32 2147483647, %v138
    %vm188 = vcmp.lt.f32.partialorder %v187, 0.0004427343
    %v189 = vsel %vm188, %v186, %v183
    %v190 = vadd.f32 %v140, 1.0
    %v191 = vlog2.pop %v190
    %v192 = vmul.f32 %v191, 0.6931472
    %v193 = vmul.f32 -0.5, %v140
    %v194 = vadd.f32 %v193, 1.0
    %v195 = vmul.f32 %v194, %v140
    %v196 = vand.u32 2147483647, %v140
    %vm197 = vcmp.lt.f32.partialorder %v196, 0.0004427343
    %v198 = vsel %vm197, %v195, %v192
    %v199 = vadd.f32 %v142, 1.0
    %v200 = vlog2.pop %v199
    %v201 = vmul.f32 %v200, 0.6931472
    %v202 = vmul.f32 -0.5, %v142
    %v203 = vadd.f32 %v202, 1.0
    %v204 = vmul.f32 %v203, %v142
    %v205 = vand.u32 2147483647, %v142
    %vm206 = vcmp.lt.f32.partialorder %v205, 0.0004427343
    %v207 = vsel %vm206, %v204, %v201
    %v208 = vadd.f32 %v144, 1.0
    %v209 = vlog2.pop %v208
    %v210 = vmul.f32 %v209, 0.6931472
    %v211 = vmul.f32 -0.5, %v144
    %v212 = vadd.f32 %v211, 1.0
    %v213 = vmul.f32 %v212, %v144
    %v214 = vand.u32 2147483647, %v144
    %vm215 = vcmp.lt.f32.partialorder %v214, 0.0004427343
    %v216 = vsel %vm215, %v213, %v210
    %v217 = vadd.f32 %v105, %v153
    %v218 = vadd.f32 %v106, %v162
    %v219 = vadd.f32 %v107, %v171
    %v220 = vadd.f32 %v108, %v180
    %v221 = vadd.f32 %v109, %v189
    %v222 = vadd.f32 %v110, %v198
    %v223 = vadd.f32 %v111, %v207
    %v224 = vadd.f32 %v112, %v216
    %v225 = vmul.f32 %v89, %v217
    %v226 = vmul.f32 %v90, %v218
    %v227 = vmul.f32 %v91, %v219
    %v228 = vmul.f32 %v92, %v220
    %v229 = vmul.f32 %v93, %v221
    %v230 = vmul.f32 %v94, %v222
    %v231 = vmul.f32 %v95, %v223
    %v232 = vmul.f32 %v96, %v224
    %v233 = vadd.f32 %v81, %v225
    %v234 = vadd.f32 %v82, %v226
    %v235 = vadd.f32 %v83, %v227
    %v236 = vadd.f32 %v84, %v228
    %v237 = vadd.f32 %v85, %v229
    %v238 = vadd.f32 %v86, %v230
    %v239 = vadd.f32 %v87, %v231
    %v240 = vadd.f32 %v88, %v232
    %241 = vst [vmem:[#allocation8] sm:$0xff] %v233
    %242 = vst [vmem:[#allocation8 + $0x8] sm:$0xff] %v234
    %243 = vst [vmem:[#allocation8 + $0x10] sm:$0xff] %v235
    %244 = vst [vmem:[#allocation8 + $0x18] sm:$0xff] %v236
    %245 = vst [vmem:[#allocation8 + $0x20] sm:$0xff] %v237
    %246 = vst [vmem:[#allocation8 + $0x28] sm:$0xff] %v238
    %247 = vst [vmem:[#allocation8 + $0x30] sm:$0xff] %v239
    %248 = vst [vmem:[#allocation8 + $0x38] sm:$0xff] %v240
    %v249 = vld [vmem:[#allocation11] sm:$0x1]
    %v250 = vlog2.pop %v217
    %v251 = vmul.f32 %v250, 0.6931472
    %v252 = vlog2.pop %v218
    %v253 = vmul.f32 %v252, 0.6931472
    %v254 = vlog2.pop %v219
    %v255 = vmul.f32 %v254, 0.6931472
    %v256 = vlog2.pop %v220
    %v257 = vmul.f32 %v256, 0.6931472
    %v258 = vlog2.pop %v221
    %v259 = vmul.f32 %v258, 0.6931472
    %v260 = vlog2.pop %v222
    %v261 = vmul.f32 %v260, 0.6931472
    %v262 = vlog2.pop %v223
    %v263 = vmul.f32 %v262, 0.6931472
    %v264 = vlog2.pop %v224
    %v265 = vmul.f32 %v264, 0.6931472
    %v266 = vsub.f32 0.0, %v251
    %v267 = vsub.f32 0.0, %v253
    %v268 = vsub.f32 0.0, %v255
    %v269 = vsub.f32 0.0, %v257
    %v270 = vsub.f32 0.0, %v259
    %v271 = vsub.f32 0.0, %v261
    %v272 = vsub.f32 0.0, %v263
    %v273 = vsub.f32 0.0, %v265
    %v274 = vmul.f32 %v89, 0.5
    %v275 = vmul.f32 %v90, 0.5
    %v276 = vmul.f32 %v91, 0.5
    %v277 = vmul.f32 %v92, 0.5
    %v278 = vmul.f32 %v93, 0.5
    %v279 = vmul.f32 %v94, 0.5
    %v280 = vmul.f32 %v95, 0.5
    %v281 = vmul.f32 %v96, 0.5
    %v282 = vmul.f32 %v274, %v89
    %v283 = vmul.f32 %v275, %v90
    %v284 = vmul.f32 %v276, %v91
    %v285 = vmul.f32 %v277, %v92
    %v286 = vmul.f32 %v278, %v93
    %v287 = vmul.f32 %v279, %v94
    %v288 = vmul.f32 %v280, %v95
    %v289 = vmul.f32 %v281, %v96
    %v290 = vsub.f32 %v266, %v282
    %v291 = vsub.f32 %v267, %v283
    %v292 = vsub.f32 %v268, %v284
    %v293 = vsub.f32 %v269, %v285
    %v294 = vsub.f32 %v270, %v286
    %v295 = vsub.f32 %v271, %v287
    %v296 = vsub.f32 %v272, %v288
    %v297 = vsub.f32 %v273, %v289
    %v298 = vmul.f32 %v233, 0.5
    %v299 = vmul.f32 %v234, 0.5
    %v300 = vmul.f32 %v235, 0.5
    %v301 = vmul.f32 %v236, 0.5
    %v302 = vmul.f32 %v237, 0.5
    %v303 = vmul.f32 %v238, 0.5
    %v304 = vmul.f32 %v239, 0.5
    %v305 = vmul.f32 %v240, 0.5
    %v306 = vmul.f32 %v298, %v233
    %v307 = vmul.f32 %v299, %v234
    %v308 = vmul.f32 %v300, %v235
    %v309 = vmul.f32 %v301, %v236
    %v310 = vmul.f32 %v302, %v237
    %v311 = vmul.f32 %v303, %v238
    %v312 = vmul.f32 %v304, %v239
    %v313 = vmul.f32 %v305, %v240
    %v314 = vadd.f32 %v290, %v306
    %v315 = vadd.f32 %v291, %v307
    %v316 = vadd.f32 %v292, %v308
    %v317 = vadd.f32 %v293, %v309
    %v318 = vadd.f32 %v294, %v310
    %v319 = vadd.f32 %v295, %v311
    %v320 = vadd.f32 %v296, %v312
    %v321 = vadd.f32 %v297, %v313
    %v322 = vadd.f32 %v314, %v315
    %v323 = vadd.f32 %v322, %v316
    %v324 = vadd.f32 %v323, %v317
    %v325 = vadd.f32 %v324, %v318
    %v326 = vadd.f32 %v325, %v319
    %v327 = vadd.f32 %v326, %v320
    %v328 = vadd.f32 %v327, %v321
    %329 = vadd.xlane.f32.xlu0 %v328
    %v330 = vpop.xlane.xlu0 %329
    %v331 = vrot.slane %v330, 4
    %v332 = vadd.f32 %v330, %v331
    %v333 = vrot.slane %v332, 2
    %v334 = vadd.f32 %v332, %v333
    %v335 = vrot.slane %v334, 1
    %v336 = vadd.f32 %v334, %v335
    %s337 = vtos %v336
    %v338 = vstv %s337
    %v339 = vadd.f32 %v249, %v338
    %vm340 = vcmask 0
    %341 = vst.msk [vmem:[#allocation11] sm:$0x1] %vm340, %v339
    // Predicated region
    $region42: #{tpu_custom_call.1} parent=1 // pred_check
      %p342 = pneg %p75
    $region43: #{tpu_custom_call.1} parent=1 // pred_check_branch
      %344 = sbr.rel (%p342) target = $region45
    $region44: #{tpu_custom_call.1} parent=1 // pred_region
      %v345 = vld [vmem:[%s3] sm:$0x1]
      %v346 = vld [vmem:[%s5] sm:$0x1]
      %v347 = vld [vmem:[%s4] sm:$0x1]
      %v348 = vmax.f32 %v347, 0.0
      %v349 = vand.u32 2147483647, %v347
      %v350 = vsub.f32 0.0, %v349
      %v351 = vmul.f32 %v350, 1.442695
      %v352 = vpow.pop %v351
      %v353 = vadd.f32 %v352, 1.0
      %v354 = vlog2.pop %v353
      %v355 = vmul.f32 %v354, 0.6931472
      %v356 = vmul.f32 -0.5, %v352
      %v357 = vadd.f32 %v356, 1.0
      %v358 = vmul.f32 %v357, %v352
      %v359 = vand.u32 2147483647, %v352
      %vm360 = vcmp.lt.f32.partialorder %v359, 0.0004427343
      %v361 = vsel %vm360, %v358, %v355
      %v362 = vadd.f32 %v348, %v361
      %v363 = vmul.f32 %v346, %v362
      %v364 = vadd.f32 %v345, %v363
      %365 = vst [vmem:[#allocation9] sm:$0x1] %v364
      %v366 = vlog2.pop %v362
      %v367 = vmul.f32 %v366, 0.6931472
      %v368 = vsub.f32 0.0, %v367
      %v369 = vmul.f32 %v346, 0.5
      %v370 = vmul.f32 %v369, %v346
      %v371 = vsub.f32 %v368, %v370
      %v372 = vmul.f32 %v364, 0.5
      %v373 = vmul.f32 %v372, %v364
      %v374 = vadd.f32 %v371, %v373
      %vm375 = vcmask 1040384
      %v376 = vsel %vm375, %v374, 0.0
      %377 = vadd.xlane.f32.xlu0 %v376
      %v378 = vpop.xlane.xlu0 %377
      %v379 = vrot.slane %v378, 4
      %v380 = vadd.f32 %v378, %v379
      %v381 = vrot.slane %v380, 2
      %v382 = vadd.f32 %v380, %v381
      %v383 = vrot.slane %v382, 1
      %v384 = vadd.f32 %v382, %v383
      %s385 = vtos %v384
      %v386 = vstv %s385
      %v387 = vld [vmem:[#allocation11] sm:$0x1]
      %v388 = vmul.f32 %v387, 3.0517578e-05
      %v389 = vmul.f32 %v386, 0.001953125
      %v390 = vadd.f32 %v388, %v389
      %391 = vst.msk [vmem:[#allocation11] sm:$0x1] %vm340, %v390
    $region45: #{tpu_custom_call.1} parent=1 // pred_fallthru
      _
    // Predicated region
    $region46: #{tpu_custom_call.1} parent=1 // pred_check
      _
    $region47: #{tpu_custom_call.1} parent=1 // pred_check_branch
      %393 = sbr.rel (0) target = $region49
    $region48: #{tpu_custom_call.1} parent=1 // pred_region
      %395 = vsyncadd [#allocation4], 0
      %s396 = sshll.u32 [#allocation8], 4
      %s397 = int_to_ptr.vmem [resolvable:$true] %s396
      %s398 = sshll.u32 %s6, 4
      %s399 = int_to_ptr.hbm [resolvable:$true] %s398
      %404 = dma.vmem_to_hbm [thread:$0]  %s397, 1024, %s399, [#allocation4], 128, 128, 8
    $region49: #{tpu_custom_call.1} parent=1 // pred_fallthru
      _
    // Predicated region
    $region50: #{tpu_custom_call.1} parent=1 // pred_check
      _
    $region51: #{tpu_custom_call.1} parent=1 // pred_check_branch
      %406 = sbr.rel (0) target = $region53
    $region52: #{tpu_custom_call.1} parent=1 // pred_region
      %408 = vsyncadd [#allocation10], 0
      %s410 = sshll.u32 [#allocation9], 4
      %s411 = int_to_ptr.vmem [resolvable:$true] %s410
      %s412 = sshll.u32 %s7, 4
      %s413 = int_to_ptr.hbm [resolvable:$true] %s412
      %415 = dma.vmem_to_hbm [thread:$0]  %s411, 16, %s413, [#allocation10]
    $region53: #{tpu_custom_call.1} parent=1 // pred_fallthru
      _
    // Predicated region
    $region54: #{tpu_custom_call.1} parent=1 // pred_check
      _
    $region55: #{tpu_custom_call.1} parent=1 // pred_check_branch
      %417 = sbr.rel (0) target = $region57
    $region56: #{tpu_custom_call.1} parent=1 // pred_region
      %419 = vsyncadd [#allocation10], 0
      %s421 = sshll.u32 [#allocation11], 4
      %s422 = int_to_ptr.vmem [resolvable:$true] %s421
      %s423 = sshll.u32 %s8, 4
      %s424 = int_to_ptr.hbm [resolvable:$true] %s423
      %426 = dma.vmem_to_hbm [thread:$0]  %s422, 16, %s424, [#allocation10]
    $region57: #{tpu_custom_call.1} parent=1 // pred_fallthru
      _
    // Predicated region
    $region58: #{tpu_custom_call.1} parent=1 // pred_check
      _
    $region59: #{tpu_custom_call.1} parent=1 // pred_check_branch
      %428 = sbr.rel (0) target = $region61
    $region60: #{tpu_custom_call.1} parent=1 // pred_region
      %430 = dma.done [#allocation4], 1024
    $region61: #{tpu_custom_call.1} parent=1 // pred_fallthru
      _
    // Predicated region
    $region62: #{tpu_custom_call.1} parent=1 // pred_check
      _
    $region63: #{tpu_custom_call.1} parent=1 // pred_check_branch
      %432 = sbr.rel (0) target = $region65
    $region64: #{tpu_custom_call.1} parent=1 // pred_region
      %434 = dma.done [#allocation10], 16
    $region65: #{tpu_custom_call.1} parent=1 // pred_fallthru
      _
    // Predicated region
    $region66: #{tpu_custom_call.1} parent=1 // pred_check
      _
    $region67: #{tpu_custom_call.1} parent=1 // pred_check_branch
      %436 = sbr.rel (0) target = $region69
    $region68: #{tpu_custom_call.1} parent=1 // pred_region
      %438 = dma.done [#allocation10], 16
    $region69: #{tpu_custom_call.1} parent=1 // pred_fallthru
      _
    %439 = vsyncpa [#allocation3], 1
    %440 = vsyncpa [#allocation6], 1
    %441 = vsyncpa [#allocation4], 1
    %442 = vsyncpa [#allocation10], 1

</llo_original>
